<compile_context>
chip_gen: v6e
topology: v6e:2x2x1
jax: 0.10.0
libtpu: 0.0.40
codegen_flags: <defaults>
</compile_context>

<pallas_src>
import math
import jax
import jax.numpy as jnp
from jax.experimental import pallas as pl
from jax.experimental.pallas import tpu as pltpu


def encoder_kernel(x_ref, w1_ref, b1_ref, w2_ref, b2_ref, o_ref):
    # Hidden layer: (TB, N) @ (N, H) + (1, H), ReLU.  Bias add is a plain
    # broadcast (VPU op hidden under the MXU matmul).
    h = jnp.dot(x_ref[...], w1_ref[...], preferred_element_type=jnp.float32)
    h = jnp.maximum(h + b1_ref[...], 0.0)
    # Output layer: (TB, H) @ (H, C) + (1, C); stored at true width C.
    y = jnp.dot(h, w2_ref[...], preferred_element_type=jnp.float32)
    o_ref[...] = (y + b2_ref[...]).astype(o_ref.dtype)


def _round_up(n, m):
    return ((n + m - 1) // m) * m


def encoder_100(x, w1, b1, w2, b2, *, block_b=2048, min_grid_steps=8,
                gridless_max=256):
    """x: (B, num_inputs) f32; w1: (num_inputs, 100); b1: (100,);
    w2: (100, code_dim); b2: (code_dim,).  Returns (B, code_dim)."""
    B, N = x.shape
    H = w1.shape[1]
    C = w2.shape[1]

    b1r = b1.reshape(1, H)
    b2r = b2.reshape(1, C)

    if B <= gridless_max:
        # Small batch: no grid, no pipeline bookkeeping — everything in VMEM,
        # all blocks equal the full (unpadded) array shapes.
        return pl.pallas_call(
            encoder_kernel,
            out_shape=jax.ShapeDtypeStruct((B, C), x.dtype),
        )(x, w1, b1r, w2, b2r)

    # Large batch: stream batch tiles at true lane widths; weights/biases stay
    # resident in VMEM.  Shrink block_b so the grid has >= min_grid_steps
    # steps (keeps both v7x TensorCores fed and the pipeline overlapped).
    bb = min(block_b, _round_up(pl.cdiv(B, min_grid_steps), 8))
    bb = max(bb, 8)
    grid = pl.cdiv(B, bb)  # boundary block rows beyond B are never stored

    flops = 2 * B * (N * H + H * C)
    bytes_accessed = 4 * (B * N + B * C + N * H + H * C + H + C)
    cost = pl.CostEstimate(flops=flops, transcendentals=0,
                           bytes_accessed=bytes_accessed)

    return pl.pallas_call(
        encoder_kernel,
        out_shape=jax.ShapeDtypeStruct((B, C), x.dtype),
        grid=(grid,),
        in_specs=[
            pl.BlockSpec((bb, N), lambda i: (i, 0)),   # x: true last dim N
            pl.BlockSpec((N, H), lambda i: (0, 0)),    # w1 resident
            pl.BlockSpec((1, H), lambda i: (0, 0)),    # b1 resident
            pl.BlockSpec((H, C), lambda i: (0, 0)),    # w2 resident
            pl.BlockSpec((1, C), lambda i: (0, 0)),    # b2 resident
        ],
        out_specs=pl.BlockSpec((bb, C), lambda i: (i, 0)),  # true width C
        compiler_params=pltpu.CompilerParams(
            dimension_semantics=("parallel",),
        ),
        cost_estimate=cost,
    )(x, w1, b1r, w2, b2r)


def xavier_uniform(key, fan_in, fan_out, shape):
    # Matches torch.nn.init.xavier_uniform_ (gain=1.0)
    bound = math.sqrt(6.0 / (fan_in + fan_out))
    return jax.random.uniform(key, shape, dtype=jnp.float32,
                              minval=-bound, maxval=bound)


if __name__ == "__main__":
    num_inputs = 32
    code_dim = 16
    hidden = 100

    key = jax.random.PRNGKey(0)
    kx, kw1, kw2, kx2, kx3 = jax.random.split(key, 5)

    # Deterministic params (Xavier uniform weights, bias = 0.01), stored
    # transposed relative to PyTorch's (out, in) layout.
    w1 = xavier_uniform(kw1, num_inputs, hidden, (num_inputs, hidden))
    b1 = jnp.full((hidden,), 0.01, dtype=jnp.float32)
    w2 = xavier_uniform(kw2, hidden, code_dim, (hidden, code_dim))
    b2 = jnp.full((code_dim,), 0.01, dtype=jnp.float32)

    def ref_fn(xi):
        return jnp.maximum(xi @ w1 + b1, 0.0) @ w2 + b2

    # Small batch -> gridless path.
    batch = 8
    x = jax.random.normal(kx, (batch, num_inputs), dtype=jnp.float32)
    out = jax.block_until_ready(encoder_100(x, w1, b1, w2, b2))
    assert out.shape == (batch, code_dim)
    assert jnp.allclose(out, ref_fn(x), atol=1e-5, rtol=1e-5)

    # Medium batch, not a multiple of the tile size -> gridded path with a
    # partial boundary block (out-of-range rows never stored).
    batch2 = 1000
    x2 = jax.random.normal(kx2, (batch2, num_inputs), dtype=jnp.float32)
    out2 = jax.block_until_ready(encoder_100(x2, w1, b1, w2, b2))
    assert out2.shape == (batch2, code_dim)
    assert jnp.allclose(out2, ref_fn(x2), atol=1e-5, rtol=1e-5)

    # Larger batch -> gridded path, full tiles, grid >= 8 steps.
    batch3 = 4096
    x3 = jax.random.normal(kx3, (batch3, num_inputs), dtype=jnp.float32)
    out3 = jax.block_until_ready(encoder_100(x3, w1, b1, w2, b2))
    assert out3.shape == (batch3, code_dim)
    assert jnp.allclose(out3, ref_fn(x3), atol=1e-5, rtol=1e-5)

    print("KERNEL_OK")
</pallas_src>

<mosaic_0001>
module attributes {stable_mosaic.version = 11 : i64} {
  func.func @encoder_kernel(%arg0: memref<8x32xf32, #tpu.memory_space<vmem>>, %arg1: memref<32x100xf32, #tpu.memory_space<vmem>>, %arg2: memref<1x100xf32, #tpu.memory_space<vmem>>, %arg3: memref<100x16xf32, #tpu.memory_space<vmem>>, %arg4: memref<1x16xf32, #tpu.memory_space<vmem>>, %arg5: memref<8x16xf32, #tpu.memory_space<vmem>>) attributes {dimension_semantics = [], scalar_prefetch = 0 : i64, scratch_operands = 0 : i64, tpu.core_type = #tpu.core_type<tc>} {
    %c0 = arith.constant 0 : index
    %c0_0 = arith.constant 0 : index
    %0 = vector.load %arg0[%c0, %c0_0] : memref<8x32xf32, #tpu.memory_space<vmem>>, vector<8x32xf32>
    %c0_1 = arith.constant 0 : index
    %c0_2 = arith.constant 0 : index
    %1 = vector.load %arg1[%c0_1, %c0_2] : memref<32x100xf32, #tpu.memory_space<vmem>>, vector<32x100xf32>
    %cst = arith.constant dense<0.000000e+00> : vector<8x100xf32>
    %2 = tpu.matmul %0, %1, %cst {dimension_numbers = #tpu.dot_dimension_numbers<[1], [0], [0], [1], [0, 0, 1, 1], [], []>} : vector<8x32xf32>, vector<32x100xf32>, vector<8x100xf32> -> vector<8x100xf32>
    %c0_3 = arith.constant 0 : index
    %c0_4 = arith.constant 0 : index
    %3 = vector.load %arg2[%c0_3, %c0_4] : memref<1x100xf32, #tpu.memory_space<vmem>>, vector<1x100xf32>
    %4 = vector.broadcast %3 : vector<1x100xf32> to vector<8x100xf32>
    %5 = arith.addf %2, %4 : vector<8x100xf32>
    %cst_5 = arith.constant 0.000000e+00 : f32
    %6 = vector.broadcast %cst_5 : f32 to vector<8x100xf32>
    %7 = arith.maximumf %5, %6 : vector<8x100xf32>
    %c0_6 = arith.constant 0 : index
    %c0_7 = arith.constant 0 : index
    %8 = vector.load %arg3[%c0_6, %c0_7] : memref<100x16xf32, #tpu.memory_space<vmem>>, vector<100x16xf32>
    %cst_8 = arith.constant dense<0.000000e+00> : vector<8x16xf32>
    %9 = tpu.matmul %7, %8, %cst_8 {dimension_numbers = #tpu.dot_dimension_numbers<[1], [0], [0], [1], [0, 0, 1, 1], [], []>} : vector<8x100xf32>, vector<100x16xf32>, vector<8x16xf32> -> vector<8x16xf32>
    %c0_9 = arith.constant 0 : index
    %c0_10 = arith.constant 0 : index
    %10 = vector.load %arg4[%c0_9, %c0_10] : memref<1x16xf32, #tpu.memory_space<vmem>>, vector<1x16xf32>
    %11 = vector.broadcast %10 : vector<1x16xf32> to vector<8x16xf32>
    %12 = arith.addf %9, %11 : vector<8x16xf32>
    %c0_11 = arith.constant 0 : index
    %c0_12 = arith.constant 0 : index
    %13 = vector.load %arg5[%c0_11, %c0_12] : memref<8x16xf32, #tpu.memory_space<vmem>>, vector<8x16xf32>
    tpu.vector_store %arg5[%c0_11, %c0_12], %12 {strides = array<i32>} : memref<8x16xf32, #tpu.memory_space<vmem>>, vector<8x16xf32>,
    return
  }
}

</mosaic_0001>

<llo_original>
// kernel: tpu_custom_call.1
$region0: #{tpu_custom_call.1}
  #allocation0 [shape = 'u32[]', space=smem, size = 0x4, offset = 0x4, fixed_abs, tag = 'smem constant byte address 0x4 - core index']
  #allocation1 [shape = 'u32[144,128]{1,0:T(1,128)}', space=vmem, size = 0x12000, scoped, tag = 'internal scratch']
  %s0 = inlined_call_operand.vmem [shape: f32[8,32], index: 0, kind: input, shape index: {}]
  %s1 = inlined_call_operand.vmem [shape: f32[32,100], index: 1, kind: input, shape index: {}]
  %s2 = inlined_call_operand.vmem [shape: f32[1,100], index: 2, kind: input, shape index: {}]
  %s3 = inlined_call_operand.vmem [shape: f32[100,16], index: 3, kind: input, shape index: {}]
  %s4 = inlined_call_operand.vmem [shape: f32[1,16], index: 4, kind: input, shape index: {}]
  %s5 = inlined_call_operand.hbm [shape: f32[8,16], index: 5, kind: output, shape index: {}]
  %s6 = sld [smem:[#allocation0]]
  $region30: #{tpu_custom_call.1} parent=0
    _
  %s8 = ssub.s32 1, %s6
  %s9 = scalar_select 0, %s8, %s6
  $region1: #{tpu_custom_call.1} parent=0
    #allocation2 [shape = 'u8[4096]{0}', space=vmem, size = 0x1000, scoped, tag = 'output window, operand 0, single buffered']
    #allocation3 [shape = 's32[1]{0}', space=sflag, size = 0x4, scoped, tag = 'scoped memory for tpu_custom_call.1']
    %10 = vsyncpa [#allocation3], 0
    // Predicated region
    $region2: #{tpu_custom_call.1} parent=1 // pred_check
      _
    $region3: #{tpu_custom_call.1} parent=1 // pred_check_branch
      %12 = sbr.rel (0) target = $region5
    $region4: #{tpu_custom_call.1} parent=1 // pred_region
      _
    $region5: #{tpu_custom_call.1} parent=1 // pred_fallthru
      _
    // Predicated region
    $region6: #{tpu_custom_call.1} parent=1 // pred_check
      _
    $region7: #{tpu_custom_call.1} parent=1 // pred_check_branch
      %14 = sbr.rel (0) target = $region9
    $region8: #{tpu_custom_call.1} parent=1 // pred_region
      _
    $region9: #{tpu_custom_call.1} parent=1 // pred_fallthru
      _
    // Predicated region
    $region10: #{tpu_custom_call.1} parent=1 // pred_check
      _
    $region11: #{tpu_custom_call.1} parent=1 // pred_check_branch
      %16 = sbr.rel (0) target = $region13
    $region12: #{tpu_custom_call.1} parent=1 // pred_region
      _
    $region13: #{tpu_custom_call.1} parent=1 // pred_fallthru
      _
    // Predicated region
    $region14: #{tpu_custom_call.1} parent=1 // pred_check
      _
    $region15: #{tpu_custom_call.1} parent=1 // pred_check_branch
      %18 = sbr.rel (0) target = $region17
    $region16: #{tpu_custom_call.1} parent=1 // pred_region
      _
    $region17: #{tpu_custom_call.1} parent=1 // pred_fallthru
      _
    // Predicated region
    $region18: #{tpu_custom_call.1} parent=1 // pred_check
      _
    $region19: #{tpu_custom_call.1} parent=1 // pred_check_branch
      %20 = sbr.rel (0) target = $region21
    $region20: #{tpu_custom_call.1} parent=1 // pred_region
      _
    $region21: #{tpu_custom_call.1} parent=1 // pred_fallthru
      _
    %v21 = vld [vmem:[%s0] sm:$0xff]
    %v22 = vld [vmem:[%s1] sm:$0xff]
    %v23 = vld [vmem:[%s1 + $0x8] sm:$0xff]
    %v24 = vld [vmem:[%s1 + $0x10] sm:$0xff]
    %v25 = vld [vmem:[%s1 + $0x18] sm:$0xff]
    %v26 = vld [vmem:[%s2] sm:$0x1]
    %v28 = vlaneseq
    %v29 = vshrl.u32 %v28, 7
    %v30 = vsub.s32 0, %v29
    %v31 = vrot.slane %v26, %v30
    %vm33 = vcmask 261120
    %v35 = vsel %vm33, %v21, 0
    %37 = vmatprep.subr.mxu0 0.0
    %38 = vmatpush1.msra.mxu0 0.0
    %39 = vmatprep.subr.mxu0 0.0
    %40 = vmatpush1.msra.mxu0 0.0
    %41 = vmatprep.subr.mxu0 0.0
    %42 = vmatpush1.msra.mxu0 0.0
    %43 = vmatprep.subr.mxu0 0.0
    %44 = vmatpush1.msra.mxu0 0.0
    %45 = vmatprep.subr.mxu0 0.0
    %46 = vmatpush1.msra.mxu0 0.0
    %47 = vmatprep.subr.mxu0 0.0
    %48 = vmatpush1.msra.mxu0 0.0
    %49 = vmatprep.subr.mxu0 0.0
    %50 = vmatpush1.msra.mxu0 0.0
    %51 = vmatprep.subr.mxu0 0.0
    %52 = vmatpush1.msra.mxu0 0.0
    %53 = vmatprep.subr.mxu0 0.0
    %54 = vmatpush1.msra.mxu0 0.0
    %55 = vmatprep.subr.mxu0 0.0
    %56 = vmatpush1.msra.mxu0 0.0
    %57 = vmatprep.subr.mxu0 0.0
    %58 = vmatpush1.msra.mxu0 0.0
    %59 = vmatprep.subr.mxu0 0.0
    %60 = vmatpush1.msra.mxu0 0.0
    %61 = vmatprep.subr.mxu0 0.0
    %62 = vmatpush1.msra.mxu0 %v25
    %63 = vmatprep.subr.mxu0 0.0
    %64 = vmatpush1.msra.mxu0 %v24
    %65 = vmatprep.subr.mxu0 0.0
    %66 = vmatpush1.msra.mxu0 %v23
    %67 = vmatprep.subr.mxu0 0.0
    %68 = vmatpush1.msra.mxu0 %v22
    %69 = vmatprep.subr.mxu0 0.0
    %70 = vmatpush2.msra.mxu0 0.0
    %71 = vmatprep.subr.mxu0 0.0
    %72 = vmatpush2.msra.mxu0 0.0
    %73 = vmatprep.subr.mxu0 0.0
    %74 = vmatpush2.msra.mxu0 0.0
    %75 = vmatprep.subr.mxu0 0.0
    %76 = vmatpush2.msra.mxu0 0.0
    %77 = vmatprep.subr.mxu0 0.0
    %78 = vmatpush2.msra.mxu0 0.0
    %79 = vmatprep.subr.mxu0 0.0
    %80 = vmatpush2.msra.mxu0 0.0
    %81 = vmatprep.subr.mxu0 0.0
    %82 = vmatpush2.msra.mxu0 0.0
    %83 = vmatprep.subr.mxu0 0.0
    %84 = vmatpush2.msra.mxu0 0.0
    %85 = vmatprep.subr.mxu0 0.0
    %86 = vmatpush2.msra.mxu0 0.0
    %87 = vmatprep.subr.mxu0 0.0
    %88 = vmatpush2.msra.mxu0 0.0
    %89 = vmatprep.subr.mxu0 0.0
    %90 = vmatpush2.msra.mxu0 0.0
    %91 = vmatprep.subr.mxu0 0.0
    %92 = vmatpush2.msra.mxu0 0.0
    %93 = vmatprep.subr.mxu0 0.0
    %94 = vmatpush2.msra.mxu0 0.0
    %95 = vmatprep.subr.mxu0 0.0
    %96 = vmatpush2.msra.mxu0 0.0
    %97 = vmatprep.subr.mxu0 0.0
    %98 = vmatpush2.msra.mxu0 0.0
    %99 = vmatprep.subr.mxu0 0.0
    %100 = vmatpush2.msra.mxu0 0.0
    %101 = vmatprep.mubr.f32.mxu0 0.0
    %102 = vmatmul.mubr.f32.gmra.mxu0 %v35
    %v103 = vpop.f32.mrf.mxu0
    %v104 = vadd.f32 %v31, %v103
    %v105 = vpop.f32.mrf.mxu0
    %106 = vdwg.mxu0
    %v107 = vmax.f32 %v104, 0.0
    %v108 = vld [vmem:[%s3] sm:$0xff]
    %v109 = vld [vmem:[%s3 + $0x8] sm:$0xff]
    %v110 = vld [vmem:[%s3 + $0x10] sm:$0xff]
    %v111 = vld [vmem:[%s3 + $0x18] sm:$0xff]
    %v112 = vld [vmem:[%s3 + $0x20] sm:$0xff]
    %v113 = vld [vmem:[%s3 + $0x28] sm:$0xff]
    %v114 = vld [vmem:[%s3 + $0x30] sm:$0xff]
    %v115 = vld [vmem:[%s3 + $0x38] sm:$0xff]
    %v116 = vld [vmem:[%s3 + $0x40] sm:$0xff]
    %v117 = vld [vmem:[%s3 + $0x48] sm:$0xff]
    %v118 = vld [vmem:[%s3 + $0x50] sm:$0xff]
    %v119 = vld [vmem:[%s3 + $0x58] sm:$0xff]
    %v120 = vld [vmem:[%s3 + $0x60] sm:$0xf]
    %v121 = vld [vmem:[%s4] sm:$0x1]
    %v123 = vlaneseq
    %v124 = vshrl.u32 %v123, 7
    %v125 = vsub.s32 0, %v124
    %v126 = vrot.slane %v121, %v125
    %vm128 = vcmask 818176
    %v130 = vsel %vm128, %v107, 0
    %vm132 = vcmask 1043456
    %v134 = vsel %vm132, %v120, 0
    %136 = vmatprep.subr.mxu0 0.0
    %137 = vmatpush1.msra.mxu0 0.0
    %138 = vmatprep.subr.mxu0 0.0
    %139 = vmatpush1.msra.mxu0 0.0
    %140 = vmatprep.subr.mxu0 0.0
    %141 = vmatpush1.msra.mxu0 0.0
    %142 = vmatprep.subr.mxu0 0.0
    %143 = vmatpush1.msra.mxu0 %v134
    %144 = vmatprep.subr.mxu0 0.0
    %145 = vmatpush1.msra.mxu0 %v119
    %146 = vmatprep.subr.mxu0 0.0
    %147 = vmatpush1.msra.mxu0 %v118
    %148 = vmatprep.subr.mxu0 0.0
    %149 = vmatpush1.msra.mxu0 %v117
    %150 = vmatprep.subr.mxu0 0.0
    %151 = vmatpush1.msra.mxu0 %v116
    %152 = vmatprep.subr.mxu0 0.0
    %153 = vmatpush1.msra.mxu0 %v115
    %154 = vmatprep.subr.mxu0 0.0
    %155 = vmatpush1.msra.mxu0 %v114
    %156 = vmatprep.subr.mxu0 0.0
    %157 = vmatpush1.msra.mxu0 %v113
    %158 = vmatprep.subr.mxu0 0.0
    %159 = vmatpush1.msra.mxu0 %v112
    %160 = vmatprep.subr.mxu0 0.0
    %161 = vmatpush1.msra.mxu0 %v111
    %162 = vmatprep.subr.mxu0 0.0
    %163 = vmatpush1.msra.mxu0 %v110
    %164 = vmatprep.subr.mxu0 0.0
    %165 = vmatpush1.msra.mxu0 %v109
    %166 = vmatprep.subr.mxu0 0.0
    %167 = vmatpush1.msra.mxu0 %v108
    %168 = vmatprep.subr.mxu0 0.0
    %169 = vmatpush2.msra.mxu0 0.0
    %170 = vmatprep.subr.mxu0 0.0
    %171 = vmatpush2.msra.mxu0 0.0
    %172 = vmatprep.subr.mxu0 0.0
    %173 = vmatpush2.msra.mxu0 0.0
    %174 = vmatprep.subr.mxu0 0.0
    %175 = vmatpush2.msra.mxu0 0.0
    %176 = vmatprep.subr.mxu0 0.0
    %177 = vmatpush2.msra.mxu0 0.0
    %178 = vmatprep.subr.mxu0 0.0
    %179 = vmatpush2.msra.mxu0 0.0
    %180 = vmatprep.subr.mxu0 0.0
    %181 = vmatpush2.msra.mxu0 0.0
    %182 = vmatprep.subr.mxu0 0.0
    %183 = vmatpush2.msra.mxu0 0.0
    %184 = vmatprep.subr.mxu0 0.0
    %185 = vmatpush2.msra.mxu0 0.0
    %186 = vmatprep.subr.mxu0 0.0
    %187 = vmatpush2.msra.mxu0 0.0
    %188 = vmatprep.subr.mxu0 0.0
    %189 = vmatpush2.msra.mxu0 0.0
    %190 = vmatprep.subr.mxu0 0.0
    %191 = vmatpush2.msra.mxu0 0.0
    %192 = vmatprep.subr.mxu0 0.0
    %193 = vmatpush2.msra.mxu0 0.0
    %194 = vmatprep.subr.mxu0 0.0
    %195 = vmatpush2.msra.mxu0 0.0
    %196 = vmatprep.subr.mxu0 0.0
    %197 = vmatpush2.msra.mxu0 0.0
    %198 = vmatprep.subr.mxu0 0.0
    %199 = vmatpush2.msra.mxu0 0.0
    %200 = vmatprep.mubr.f32.mxu0 0.0
    %201 = vmatmul.mubr.f32.gmra.mxu0 %v130
    %v202 = vpop.f32.mrf.mxu0
    %v203 = vadd.f32 %v126, %v202
    %v204 = vpop.f32.mrf.mxu0
    %205 = vdwg.mxu0
    %vm206 = vcmask 130048
    %207 = vst.msk [vmem:[#allocation2] sm:$0xff] %vm206, %v203
    // Predicated region
    $region22: #{tpu_custom_call.1} parent=1 // pred_check
      _
    $region23: #{tpu_custom_call.1} parent=1 // pred_check_branch
      %209 = sbr.rel (0) target = $region25
    $region24: #{tpu_custom_call.1} parent=1 // pred_region
      %s211 = ssub.s32 128, 128
      %212 = vsyncadd [#allocation3], %s211
      %s214 = sshll.u32 [#allocation2], 4
      %s215 = int_to_ptr.vmem [resolvable:$true] %s214
      %217 = dma.vmem_to_hbm [thread:$0]  %s215, 128, %s5, [#allocation3]
    $region25: #{tpu_custom_call.1} parent=1 // pred_fallthru
      _
    // Predicated region
    $region26: #{tpu_custom_call.1} parent=1 // pred_check
      _
    $region27: #{tpu_custom_call.1} parent=1 // pred_check_branch
      %219 = sbr.rel (0) target = $region29
    $region28: #{tpu_custom_call.1} parent=1 // pred_region
      %220 = dma.done [#allocation3], 128
    $region29: #{tpu_custom_call.1} parent=1 // pred_fallthru
      _
    %221 = vsyncpa [#allocation3], 1

</llo_original>
